<compile_context>
chip_gen: v7x
topology: tpu7x:2x2x1
jax: 0.10.0
libtpu: 0.0.40
codegen_flags: <defaults>
</compile_context>

<pallas_src>
import jax
import jax.numpy as jnp
from jax.experimental import pallas as pl
from jax.experimental.pallas import tpu as pltpu


def _double_poisson_kernel(xt_ref, w1_ref, b1_ref, wh_ref, bh_ref, out_ref):
    # Hidden layer, computed transposed:  h_t = W1 @ x_t  -> (H, TB)
    # W1 is (H, in), x_t is (in, TB): native MXU contraction, f32 accumulation.
    h = jnp.dot(w1_ref[...], xt_ref[...], preferred_element_type=jnp.float32)
    h = jnp.maximum(h + b1_ref[...], 0.0)      # b1 is (H, 1): broadcasts over batch lanes

    # Fused heads: (2, H) @ (H, TB) -> (2, TB).  Row 0 = beta logits, row 1 = alpha.
    z = jnp.dot(wh_ref[...], h, preferred_element_type=jnp.float32)

    # Scalar head biases come from SMEM.  Two sub-slice stores (no sublane concat).
    out_ref[0:1, :] = (z[0:1, :] + bh_ref[0]).astype(out_ref.dtype)
    out_ref[1:2, :] = jnp.exp(z[1:2, :] + bh_ref[1]).astype(out_ref.dtype)  # exp on EUP


def double_poisson_forward(x, w1, b1, w_heads, b_heads, *, tb=16384):
    """x: (B, input_size) f32.

    w1:      (H, input_size)  — PyTorch (out, in) layout
    b1:      (H, 1)
    w_heads: (2, H)           — row 0 = beta weights, row 1 = alpha weights
    b_heads: (2,)             — [beta bias, alpha bias]
    tb:      batch tile (rows per grid step); sweep per generation.

    Returns (beta, alpha), each (B, 1) float32.
    """
    B, in_size = x.shape
    H = w1.shape[0]

    # Feature-major x: (in_size, B).  Lane-dense batch axis for DMA + MXU.
    x_t = x.T

    if B <= tb:
        # Single full-extent block: satisfies the (8,128) rule via "equals full dim".
        TB = B
        Bp = B
    else:
        # Fixed tile, pad ragged tail up to a TB multiple (TB is a 128-multiple).
        TB = tb
        Bp = ((B + TB - 1) // TB) * TB
        if Bp != B:
            x_t = jnp.pad(x_t, ((0, 0), (0, Bp - B)))

    grid = (Bp // TB,)

    out = pl.pallas_call(
        _double_poisson_kernel,
        out_shape=jax.ShapeDtypeStruct((2, Bp), jnp.float32),
        grid=grid,
        in_specs=[
            pl.BlockSpec((in_size, TB), lambda i: (0, i)),      # x_t: tiled over batch (lane-dense)
            pl.BlockSpec((H, in_size), lambda i: (0, 0)),       # w1: VMEM-resident
            pl.BlockSpec((H, 1), lambda i: (0, 0)),             # b1: VMEM-resident
            pl.BlockSpec((2, H), lambda i: (0, 0)),             # fused head weights
            pl.BlockSpec(memory_space=pltpu.MemorySpace.SMEM),  # fused head biases
        ],
        out_specs=pl.BlockSpec((2, TB), lambda i: (0, i)),
        compiler_params=pltpu.CompilerParams(
            dimension_semantics=("parallel",),
        ),
    )(x_t, w1, b1, w_heads, b_heads)

    beta = out[0, :B].reshape(B, 1)
    alpha = out[1, :B].reshape(B, 1)
    return beta, alpha


def init_params(key, input_size, hidden_size):
    """PyTorch nn.Linear-style init: U(-1/sqrt(fan_in), 1/sqrt(fan_in)).

    Weights stay in the native PyTorch (out_features, in_features) layout; the
    two heads are pre-fused into a (2, H) weight and a (2,) bias.
    """
    k1, k2, k3, k4, k5, k6 = jax.random.split(key, 6)
    lim1 = 1.0 / jnp.sqrt(jnp.float32(input_size))
    lim2 = 1.0 / jnp.sqrt(jnp.float32(hidden_size))

    w1 = jax.random.uniform(k1, (hidden_size, input_size), jnp.float32, -lim1, lim1)
    b1 = jax.random.uniform(k2, (hidden_size, 1), jnp.float32, -lim1, lim1)
    wb = jax.random.uniform(k3, (1, hidden_size), jnp.float32, -lim2, lim2)
    bb = jax.random.uniform(k4, (1,), jnp.float32, -lim2, lim2)
    wa = jax.random.uniform(k5, (1, hidden_size), jnp.float32, -lim2, lim2)
    ba = jax.random.uniform(k6, (1,), jnp.float32, -lim2, lim2)

    w_heads = jnp.concatenate([wb, wa], axis=0)   # (2, H)
    b_heads = jnp.concatenate([bb, ba], axis=0)   # (2,)
    return w1, b1, w_heads, b_heads


def _reference(x, w1, b1, w_heads, b_heads):
    h = jnp.maximum(x @ w1.T + b1.reshape(1, -1), 0.0)
    beta = h @ w_heads[0:1, :].T + b_heads[0]
    alpha = jnp.exp(h @ w_heads[1:2, :].T + b_heads[1])
    return beta, alpha


if __name__ == "__main__":
    input_size = 16
    hidden_size = 32

    key = jax.random.PRNGKey(0)
    kx, kp, kx2 = jax.random.split(key, 3)
    w1, b1, w_heads, b_heads = init_params(kp, input_size, hidden_size)

    # Small batch: single full-extent block path.
    batch = 8
    x = jax.random.normal(kx, (batch, input_size), jnp.float32)
    beta, alpha = double_poisson_forward(x, w1, b1, w_heads, b_heads)
    jax.block_until_ready((beta, alpha))
    beta_ref, alpha_ref = _reference(x, w1, b1, w_heads, b_heads)
    assert beta.shape == (batch, 1) and alpha.shape == (batch, 1)
    assert jnp.allclose(beta, beta_ref, atol=1e-5, rtol=1e-5)
    assert jnp.allclose(alpha, alpha_ref, atol=1e-5, rtol=1e-5)

    # Ragged batch: exercises fixed-TB tiling + padding (2 grid steps, tb=128).
    batch2 = 200
    x2 = jax.random.normal(kx2, (batch2, input_size), jnp.float32)
    beta2, alpha2 = double_poisson_forward(x2, w1, b1, w_heads, b_heads, tb=128)
    jax.block_until_ready((beta2, alpha2))
    beta2_ref, alpha2_ref = _reference(x2, w1, b1, w_heads, b_heads)
    assert beta2.shape == (batch2, 1) and alpha2.shape == (batch2, 1)
    assert jnp.allclose(beta2, beta2_ref, atol=1e-5, rtol=1e-5)
    assert jnp.allclose(alpha2, alpha2_ref, atol=1e-5, rtol=1e-5)

    print("KERNEL_OK")
</pallas_src>

<mosaic_0001>
module attributes {stable_mosaic.version = 11 : i64} {
  func.func @_double_poisson_kernel(%arg0: i32, %arg1: memref<16x8xf32, #tpu.memory_space<vmem>>, %arg2: memref<32x16xf32, #tpu.memory_space<vmem>>, %arg3: memref<32x1xf32, #tpu.memory_space<vmem>>, %arg4: memref<2x32xf32, #tpu.memory_space<vmem>>, %arg5: memref<2xf32, #tpu.memory_space<smem>>, %arg6: memref<2x8xf32, #tpu.memory_space<vmem>>) attributes {dimension_semantics = [#tpu.dimension_semantics<parallel>], iteration_bounds = array<i64: 1>, scalar_prefetch = 0 : i64, scratch_operands = 0 : i64, tpu.core_type = #tpu.core_type<tc>, window_params = [{transform_indices = @transform_0, window_bounds = array<i64: 16, 8>}, {pipeline_mode = #tpu.pipeline_mode<synchronous>, transform_indices = @transform_1, window_bounds = array<i64: 32, 16>}, {pipeline_mode = #tpu.pipeline_mode<synchronous>, transform_indices = @transform_2, window_bounds = array<i64: 32, 1>}, {pipeline_mode = #tpu.pipeline_mode<synchronous>, transform_indices = @transform_3, window_bounds = array<i64: 2, 32>}, {transform_indices = @transform_4, window_bounds = array<i64: 2>}, {transform_indices = @transform_5, window_bounds = array<i64: 2, 8>}]} {
    %c0 = arith.constant 0 : index
    %c0_0 = arith.constant 0 : index
    %0 = vector.load %arg2[%c0, %c0_0] : memref<32x16xf32, #tpu.memory_space<vmem>>, vector<32x16xf32>
    %c0_1 = arith.constant 0 : index
    %c0_2 = arith.constant 0 : index
    %1 = vector.load %arg1[%c0_1, %c0_2] : memref<16x8xf32, #tpu.memory_space<vmem>>, vector<16x8xf32>
    %cst = arith.constant dense<0.000000e+00> : vector<32x8xf32>
    %2 = tpu.matmul %0, %1, %cst {dimension_numbers = #tpu.dot_dimension_numbers<[1], [0], [0], [1], [0, 0, 1, 1], [], []>} : vector<32x16xf32>, vector<16x8xf32>, vector<32x8xf32> -> vector<32x8xf32>
    %c0_3 = arith.constant 0 : index
    %c0_4 = arith.constant 0 : index
    %3 = vector.load %arg3[%c0_3, %c0_4] : memref<32x1xf32, #tpu.memory_space<vmem>>, vector<32x1xf32>
    %4 = vector.broadcast %3 : vector<32x1xf32> to vector<32x8xf32>
    %5 = arith.addf %2, %4 : vector<32x8xf32>
    %cst_5 = arith.constant 0.000000e+00 : f32
    %6 = vector.broadcast %cst_5 : f32 to vector<32x8xf32>
    %7 = arith.maximumf %5, %6 : vector<32x8xf32>
    %c0_6 = arith.constant 0 : index
    %c0_7 = arith.constant 0 : index
    %8 = vector.load %arg4[%c0_6, %c0_7] : memref<2x32xf32, #tpu.memory_space<vmem>>, vector<2x32xf32>
    %cst_8 = arith.constant dense<0.000000e+00> : vector<2x8xf32>
    %9 = tpu.matmul %8, %7, %cst_8 {dimension_numbers = #tpu.dot_dimension_numbers<[1], [0], [0], [1], [0, 0, 1, 1], [], []>} : vector<2x32xf32>, vector<32x8xf32>, vector<2x8xf32> -> vector<2x8xf32>
    %10 = vector.extract_strided_slice %9 {offsets = [0, 0], sizes = [1, 8], strides = [1, 1]} : vector<2x8xf32> to vector<1x8xf32>
    %c0_9 = arith.constant 0 : index
    %11 = memref.load %arg5[%c0_9] : memref<2xf32, #tpu.memory_space<smem>>
    %12 = vector.broadcast %11 : f32 to vector<1x8xf32>
    %13 = arith.addf %10, %12 : vector<1x8xf32>
    %c0_10 = arith.constant 0 : index
    %c0_11 = arith.constant 0 : index
    %14 = vector.load %arg6[%c0_10, %c0_11] : memref<2x8xf32, #tpu.memory_space<vmem>>, vector<1x8xf32>
    tpu.vector_store %arg6[%c0_10, %c0_11], %13 {strides = array<i32>} : memref<2x8xf32, #tpu.memory_space<vmem>>, vector<1x8xf32>,
    %15 = vector.extract_strided_slice %9 {offsets = [1, 0], sizes = [1, 8], strides = [1, 1]} : vector<2x8xf32> to vector<1x8xf32>
    %c1 = arith.constant 1 : index
    %16 = memref.load %arg5[%c1] : memref<2xf32, #tpu.memory_space<smem>>
    %17 = vector.broadcast %16 : f32 to vector<1x8xf32>
    %18 = arith.addf %15, %17 : vector<1x8xf32>
    %19 = math.exp %18 : vector<1x8xf32>
    %c1_12 = arith.constant 1 : index
    %c0_13 = arith.constant 0 : index
    %20 = vector.load %arg6[%c1_12, %c0_13] : memref<2x8xf32, #tpu.memory_space<vmem>>, vector<1x8xf32>
    tpu.vector_store %arg6[%c1_12, %c0_13], %19 {strides = array<i32>} : memref<2x8xf32, #tpu.memory_space<vmem>>, vector<1x8xf32>,
    return
  }
  func.func @transform_0(%arg0: i32) -> (i32, i32) {
    %c0_i32 = arith.constant 0 : i32
    %c0_i32_0 = arith.constant 0 : i32
    return %c0_i32, %arg0 : i32, i32
  }
  func.func @transform_1(%arg0: i32) -> (i32, i32) {
    %c0_i32 = arith.constant 0 : i32
    %c0_i32_0 = arith.constant 0 : i32
    %c0_i32_1 = arith.constant 0 : i32
    return %c0_i32, %c0_i32_0 : i32, i32
  }
  func.func @transform_2(%arg0: i32) -> (i32, i32) {
    %c0_i32 = arith.constant 0 : i32
    %c0_i32_0 = arith.constant 0 : i32
    %c0_i32_1 = arith.constant 0 : i32
    return %c0_i32, %c0_i32_0 : i32, i32
  }
  func.func @transform_3(%arg0: i32) -> (i32, i32) {
    %c0_i32 = arith.constant 0 : i32
    %c0_i32_0 = arith.constant 0 : i32
    %c0_i32_1 = arith.constant 0 : i32
    return %c0_i32, %c0_i32_0 : i32, i32
  }
  func.func @transform_4(%arg0: i32) -> i32 {
    %c0_i32 = arith.constant 0 : i32
    %c0_i32_0 = arith.constant 0 : i32
    return %c0_i32 : i32
  }
  func.func @transform_5(%arg0: i32) -> (i32, i32) {
    %c0_i32 = arith.constant 0 : i32
    %c0_i32_0 = arith.constant 0 : i32
    return %c0_i32, %arg0 : i32, i32
  }
}

</mosaic_0001>

<llo_original>
// kernel: tpu_custom_call.1
$region0: #{tpu_custom_call.1}
  #allocation0 [shape = 'u32[]', space=smem, size = 0x4, offset = 0x4, fixed_abs, tag = 'smem constant byte address 0x4 - core index']
  #allocation1 [shape = 'u32[144,128]{1,0:T(1,128)}', space=vmem, size = 0x12000, scoped, tag = 'internal scratch']
  %s0 = inlined_call_operand.vmem [shape: f32[16,8], index: 0, kind: input, shape index: {}]
  %s1 = inlined_call_operand.vmem [shape: f32[32,16], index: 1, kind: input, shape index: {}]
  %s2 = inlined_call_operand.vmem [shape: f32[32,1], index: 2, kind: input, shape index: {}]
  %s3 = inlined_call_operand.vmem [shape: f32[2,32], index: 3, kind: input, shape index: {}]
  %s4 = inlined_call_operand.vmem [shape: f32[2], index: 4, kind: input, shape index: {}]
  %s5 = inlined_call_operand.hbm [shape: f32[2,8], index: 5, kind: output, shape index: {}]
  %s6 = sld [smem:[#allocation0]]
  $region34: #{tpu_custom_call.1} parent=0
    _
  %s8 = ssub.s32 1, %s6
  %s9 = scalar_select 0, %s8, %s6
  $region1: #{tpu_custom_call.1} parent=0
    #allocation2 [shape = 'u8[512]{0}', space=smem, size = 0x200, scoped, tag = 'input window, operand 4, single buffered']
    #allocation3 [shape = 's32[1]{0}', space=sflag, size = 0x4, scoped, tag = 'scoped memory for tpu_custom_call.1']
    #allocation4 [shape = 's32[1]{0}', space=sflag, size = 0x4, scoped, tag = 'scoped memory for tpu_custom_call.1']
    #allocation5 [shape = 'u8[1024]{0}', space=vmem, size = 0x400, scoped, tag = 'output window, operand 0, single buffered']
    %10 = vsyncpa [#allocation4], 0
    %11 = vsyncpa [#allocation3], 0
    // Predicated region
    $region2: #{tpu_custom_call.1} parent=1 // pred_check
      _
    $region3: #{tpu_custom_call.1} parent=1 // pred_check_branch
      %13 = sbr.rel (0) target = $region5
    $region4: #{tpu_custom_call.1} parent=1 // pred_region
      _
    $region5: #{tpu_custom_call.1} parent=1 // pred_fallthru
      _
    // Predicated region
    $region6: #{tpu_custom_call.1} parent=1 // pred_check
      _
    $region7: #{tpu_custom_call.1} parent=1 // pred_check_branch
      %15 = sbr.rel (0) target = $region9
    $region8: #{tpu_custom_call.1} parent=1 // pred_region
      _
    $region9: #{tpu_custom_call.1} parent=1 // pred_fallthru
      _
    // Predicated region
    $region10: #{tpu_custom_call.1} parent=1 // pred_check
      _
    $region11: #{tpu_custom_call.1} parent=1 // pred_check_branch
      %17 = sbr.rel (0) target = $region13
    $region12: #{tpu_custom_call.1} parent=1 // pred_region
      _
    $region13: #{tpu_custom_call.1} parent=1 // pred_fallthru
      _
    // Predicated region
    $region14: #{tpu_custom_call.1} parent=1 // pred_check
      _
    $region15: #{tpu_custom_call.1} parent=1 // pred_check_branch
      %19 = sbr.rel (0) target = $region17
    $region16: #{tpu_custom_call.1} parent=1 // pred_region
      _
    $region17: #{tpu_custom_call.1} parent=1 // pred_fallthru
      _
    // Predicated region
    $region18: #{tpu_custom_call.1} parent=1 // pred_check
      _
    $region19: #{tpu_custom_call.1} parent=1 // pred_check_branch
      %21 = sbr.rel (0) target = $region21
    $region20: #{tpu_custom_call.1} parent=1 // pred_region
      %s23 = ssub.s32 16, 16
      %24 = vsyncadd [#allocation4], %s23
      %s26 = sshll.u32 %s4, 4
      %s27 = int_to_ptr.vmem [resolvable:$true] %s26
      %29 = dma.vmem_to_smem %s27, 16, [#allocation2], [#allocation4]
    $region21: #{tpu_custom_call.1} parent=1 // pred_fallthru
      _
    // Predicated region
    $region22: #{tpu_custom_call.1} parent=1 // pred_check
      _
    $region23: #{tpu_custom_call.1} parent=1 // pred_check_branch
      %31 = sbr.rel (0) target = $region25
    $region24: #{tpu_custom_call.1} parent=1 // pred_region
      %32 = dma.done [#allocation4], 16
    $region25: #{tpu_custom_call.1} parent=1 // pred_fallthru
      _
    %33 = sfence
    %v34 = vld [vmem:[%s1] sm:$0xff]
    %v35 = vld [vmem:[%s1 + $0x8] sm:$0xff]
    %v36 = vld [vmem:[%s1 + $0x10] sm:$0xff]
    %v37 = vld [vmem:[%s1 + $0x18] sm:$0xff]
    %v38 = vld [vmem:[%s0] sm:$0xff]
    %v39 = vld [vmem:[%s0 + $0x8] sm:$0xff]
    %v40 = vld [vmem:[%s2] sm:$0xff]
    %v41 = vld [vmem:[%s2 + $0x8] sm:$0xff]
    %v42 = vld [vmem:[%s2 + $0x10] sm:$0xff]
    %v43 = vld [vmem:[%s2 + $0x18] sm:$0xff]
    %45 = vset.pattern.permute.xlu0 0
    %46 = vperm.xlu0 %45, %v40
    %v47 = vpop.permute.xlu0 %46
    %50 = vset.pattern.permute.xlu0 0
    %51 = vperm.xlu0 %50, %v41
    %v52 = vpop.permute.xlu0 %51
    %55 = vset.pattern.permute.xlu0 0
    %56 = vperm.xlu0 %55, %v42
    %v57 = vpop.permute.xlu0 %56
    %60 = vset.pattern.permute.xlu0 0
    %61 = vperm.xlu0 %60, %v43
    %v62 = vpop.permute.xlu0 %61
    %vm64 = vcmask 130048
    %v66 = vsel %vm64, %v34, 0
    %v69 = vsel %vm64, %v35, 0
    %v72 = vsel %vm64, %v36, 0
    %v75 = vsel %vm64, %v37, 0
    %77 = vmatprep.subr.mxu0 0.0
    %78 = vmatpush1.msra.mxu0 %v38
    %79 = vmatprep.subr.mxu0 0.0
    %80 = vmatpush1.msra.mxu0 %v39
    %81 = vmatprep.subr.mxu0 0.0
    %82 = vmatpush1.msra.mxu0 0.0
    %83 = vmatprep.subr.mxu0 0.0
    %84 = vmatpush1.msra.mxu0 0.0
    %85 = vmatprep.subr.mxu0 0.0
    %86 = vmatpush1.msra.mxu0 0.0
    %87 = vmatprep.subr.mxu0 0.0
    %88 = vmatpush1.msra.mxu0 0.0
    %89 = vmatprep.subr.mxu0 0.0
    %90 = vmatpush1.msra.mxu0 0.0
    %91 = vmatprep.subr.mxu0 0.0
    %92 = vmatpush1.msra.mxu0 0.0
    %93 = vmatprep.subr.mxu0 0.0
    %94 = vmatpush1.msra.mxu0 0.0
    %95 = vmatprep.subr.mxu0 0.0
    %96 = vmatpush1.msra.mxu0 0.0
    %97 = vmatprep.subr.mxu0 0.0
    %98 = vmatpush1.msra.mxu0 0.0
    %99 = vmatprep.subr.mxu0 0.0
    %100 = vmatpush1.msra.mxu0 0.0
    %101 = vmatprep.subr.mxu0 0.0
    %102 = vmatpush1.msra.mxu0 0.0
    %103 = vmatprep.subr.mxu0 0.0
    %104 = vmatpush1.msra.mxu0 0.0
    %105 = vmatprep.subr.mxu0 0.0
    %106 = vmatpush1.msra.mxu0 0.0
    %107 = vmatprep.subr.mxu0 0.0
    %108 = vmatpush1.msra.mxu0 0.0
    %109 = vmatprep.subr.mxu0 0.0
    %110 = vmatpush1.msra.mxu0 0.0
    %111 = vmatprep.subr.mxu0 0.0
    %112 = vmatpush1.msra.mxu0 0.0
    %113 = vmatprep.subr.mxu0 0.0
    %114 = vmatpush1.msra.mxu0 0.0
    %115 = vmatprep.subr.mxu0 0.0
    %116 = vmatpush1.msra.mxu0 0.0
    %117 = vmatprep.subr.mxu0 0.0
    %118 = vmatpush1.msra.mxu0 0.0
    %119 = vmatprep.subr.mxu0 0.0
    %120 = vmatpush1.msra.mxu0 0.0
    %121 = vmatprep.subr.mxu0 0.0
    %122 = vmatpush1.msra.mxu0 0.0
    %123 = vmatprep.subr.mxu0 0.0
    %124 = vmatpush1.msra.mxu0 0.0
    %125 = vmatprep.subr.mxu0 0.0
    %126 = vmatpush1.msra.mxu0 0.0
    %127 = vmatprep.subr.mxu0 0.0
    %128 = vmatpush1.msra.mxu0 0.0
    %129 = vmatprep.subr.mxu0 0.0
    %130 = vmatpush1.msra.mxu0 0.0
    %131 = vmatprep.subr.mxu0 0.0
    %132 = vmatpush1.msra.mxu0 0.0
    %133 = vmatprep.subr.mxu0 0.0
    %134 = vmatpush1.msra.mxu0 0.0
    %135 = vmatprep.subr.mxu0 0.0
    %136 = vmatpush1.msra.mxu0 0.0
    %137 = vmatprep.subr.mxu0 0.0
    %138 = vmatpush1.msra.mxu0 0.0
    %139 = vmatprep.subr.mxu0 0.0
    %140 = vmatpush1.msra.mxu0 0.0
    %141 = vmatprep.mubr.f32.mxu0 0.0
    %142 = vmatmul.mubr.f32.gmra.mrb[0].mxu0 %v66
    %v143 = vpop.f32.mrb[0].mxu0
    %v144 = vadd.f32 %v47, %v143
    %v145 = vpop.f32.mrb[0].mxu0
    %146 = vmatprep.mubr.f32.mxu0 0.0
    %147 = vmatmul.mubr.f32.gmra.mrb[0].mxu0 %v69
    %v148 = vpop.f32.mrb[0].mxu0
    %v149 = vadd.f32 %v52, %v148
    %v150 = vpop.f32.mrb[0].mxu0
    %151 = vmatprep.mubr.f32.mxu0 0.0
    %152 = vmatmul.mubr.f32.gmra.mrb[0].mxu0 %v72
    %v153 = vpop.f32.mrb[0].mxu0
    %v154 = vadd.f32 %v57, %v153
    %v155 = vpop.f32.mrb[0].mxu0
    %156 = vmatprep.mubr.f32.mxu0 0.0
    %157 = vmatmul.mubr.f32.gmra.mrb[0].mxu0 %v75
    %v158 = vpop.f32.mrb[0].mxu0
    %v159 = vadd.f32 %v62, %v158
    %v160 = vpop.f32.mrb[0].mxu0
    %161 = vdwg.mxu0
    %v162 = vmax.f32 %v144, 0.0
    %v163 = vmax.f32 %v149, 0.0
    %v164 = vmax.f32 %v154, 0.0
    %v165 = vmax.f32 %v159, 0.0
    %v166 = vld [vmem:[%s3] sm:$0x3]
    %vm167 = vcmask 261120
    %v169 = vsel %vm167, %v166, 0
    %171 = vmatprep.subr.mxu0 0.0
    %172 = vmatpush1.msra.mxu0 %v162
    %173 = vmatprep.subr.mxu0 0.0
    %174 = vmatpush1.msra.mxu0 %v163
    %175 = vmatprep.subr.mxu0 0.0
    %176 = vmatpush1.msra.mxu0 %v164
    %177 = vmatprep.subr.mxu0 0.0
    %178 = vmatpush1.msra.mxu0 %v165
    %179 = vmatprep.subr.mxu0 0.0
    %180 = vmatpush1.msra.mxu0 0.0
    %181 = vmatprep.subr.mxu0 0.0
    %182 = vmatpush1.msra.mxu0 0.0
    %183 = vmatprep.subr.mxu0 0.0
    %184 = vmatpush1.msra.mxu0 0.0
    %185 = vmatprep.subr.mxu0 0.0
    %186 = vmatpush1.msra.mxu0 0.0
    %187 = vmatprep.subr.mxu0 0.0
    %188 = vmatpush1.msra.mxu0 0.0
    %189 = vmatprep.subr.mxu0 0.0
    %190 = vmatpush1.msra.mxu0 0.0
    %191 = vmatprep.subr.mxu0 0.0
    %192 = vmatpush1.msra.mxu0 0.0
    %193 = vmatprep.subr.mxu0 0.0
    %194 = vmatpush1.msra.mxu0 0.0
    %195 = vmatprep.subr.mxu0 0.0
    %196 = vmatpush1.msra.mxu0 0.0
    %197 = vmatprep.subr.mxu0 0.0
    %198 = vmatpush1.msra.mxu0 0.0
    %199 = vmatprep.subr.mxu0 0.0
    %200 = vmatpush1.msra.mxu0 0.0
    %201 = vmatprep.subr.mxu0 0.0
    %202 = vmatpush1.msra.mxu0 0.0
    %203 = vmatprep.subr.mxu0 0.0
    %204 = vmatpush1.msra.mxu0 0.0
    %205 = vmatprep.subr.mxu0 0.0
    %206 = vmatpush1.msra.mxu0 0.0
    %207 = vmatprep.subr.mxu0 0.0
    %208 = vmatpush1.msra.mxu0 0.0
    %209 = vmatprep.subr.mxu0 0.0
    %210 = vmatpush1.msra.mxu0 0.0
    %211 = vmatprep.subr.mxu0 0.0
    %212 = vmatpush1.msra.mxu0 0.0
    %213 = vmatprep.subr.mxu0 0.0
    %214 = vmatpush1.msra.mxu0 0.0
    %215 = vmatprep.subr.mxu0 0.0
    %216 = vmatpush1.msra.mxu0 0.0
    %217 = vmatprep.subr.mxu0 0.0
    %218 = vmatpush1.msra.mxu0 0.0
    %219 = vmatprep.subr.mxu0 0.0
    %220 = vmatpush1.msra.mxu0 0.0
    %221 = vmatprep.subr.mxu0 0.0
    %222 = vmatpush1.msra.mxu0 0.0
    %223 = vmatprep.subr.mxu0 0.0
    %224 = vmatpush1.msra.mxu0 0.0
    %225 = vmatprep.subr.mxu0 0.0
    %226 = vmatpush1.msra.mxu0 0.0
    %227 = vmatprep.subr.mxu0 0.0
    %228 = vmatpush1.msra.mxu0 0.0
    %229 = vmatprep.subr.mxu0 0.0
    %230 = vmatpush1.msra.mxu0 0.0
    %231 = vmatprep.subr.mxu0 0.0
    %232 = vmatpush1.msra.mxu0 0.0
    %233 = vmatprep.subr.mxu0 0.0
    %234 = vmatpush1.msra.mxu0 0.0
    %235 = vmatprep.mubr.f32.mxu0 0.0
    %236 = vmatmul.mubr.f32.gmra.mrb[0].mxu0 %v169
    %v237 = vpop.f32.mrb[0].mxu0
    %v238 = vadd.f32 0.0, %v237
    %v239 = vpop.f32.mrb[0].mxu0
    %240 = vdwg.mxu0
    %s241 = sld [smem:[#allocation2]]
    %v242 = vstv %s241
    %v243 = vadd.f32 %v238, %v242
    %vm244 = vcmask 57344
    %245 = vst.msk [vmem:[#allocation5] sm:$0x1] %vm244, %v243
    %s246 = sld [smem:[#allocation2 + $0x1]]
    %v247 = vstv %s246
    %v248 = vadd.f32 %v238, %v247
    %v249 = vmul.f32 %v248, 1.442695
    %v250 = vpow.pop %v249
    %vm251 = vcmask 58369
    %252 = vst.msk [vmem:[#allocation5] sm:$0x2] %vm251, %v250
    // Predicated region
    $region26: #{tpu_custom_call.1} parent=1 // pred_check
      _
    $region27: #{tpu_custom_call.1} parent=1 // pred_check_branch
      %254 = sbr.rel (0) target = $region29
    $region28: #{tpu_custom_call.1} parent=1 // pred_region
      %s256 = ssub.s32 32, 32
      %257 = vsyncadd [#allocation3], %s256
      %s259 = sshll.u32 [#allocation5], 4
      %s260 = int_to_ptr.vmem [resolvable:$true] %s259
      %262 = dma.vmem_to_hbm [thread:$0]  %s260, 32, %s5, [#allocation3]
    $region29: #{tpu_custom_call.1} parent=1 // pred_fallthru
      _
    // Predicated region
    $region30: #{tpu_custom_call.1} parent=1 // pred_check
      _
    $region31: #{tpu_custom_call.1} parent=1 // pred_check_branch
      %264 = sbr.rel (0) target = $region33
    $region32: #{tpu_custom_call.1} parent=1 // pred_region
      %265 = dma.done [#allocation3], 32
    $region33: #{tpu_custom_call.1} parent=1 // pred_fallthru
      _
    %266 = vsyncpa [#allocation3], 1
    %267 = vsyncpa [#allocation4], 1

</llo_original>
